<compile_context>
chip_gen: v5e
topology: v5e:2x2
jax: 0.10.0
libtpu: 0.0.40
codegen_flags: <defaults>
</compile_context>

<pallas_src>
import jax
import jax.numpy as jnp
from jax.experimental import pallas as pl
from jax.experimental.pallas import tpu as pltpu


def _make_additive_attn_kernel(key_tile):
    tk = key_tile

    def kernel(q_ref, k_ref, v_ref, wqt_ref, wkt_ref, wv_ref, o_ref):
        TB, Lq, Dq = q_ref.shape
        _, Lk, Dk = k_ref.shape
        Dv = v_ref.shape[-1]
        Hp = wqt_ref.shape[-1]

        # ---- Projections: fold batch into M so the MXU gets one big tile. ----
        q2 = q_ref[...].reshape(TB * Lq, Dq)
        k2 = k_ref[...].reshape(TB * Lk, Dk)
        # (On v6e/v7x the operands could be cast to bf16 here for higher MXU
        #  throughput with f32 accumulation; kept f32 for exact semantics.)
        qp = jnp.dot(q2, wqt_ref[...], preferred_element_type=jnp.float32)
        kp = jnp.dot(k2, wkt_ref[...], preferred_element_type=jnp.float32)
        qp = qp.reshape(TB, Lq, Hp)
        kp = kp.reshape(TB, Lk, Hp)

        wv = wv_ref[0]  # (Hp,), zero-padded beyond the real hidden width.

        # ---- Additive scores, tiled over the key axis (bounded VMEM). ----
        slabs = []
        for t in range(Lk // tk):
            kp_blk = kp[:, t * tk:(t + 1) * tk, :]                # (TB, tk, Hp)
            feats = qp[:, :, None, :] + kp_blk[:, None, :, :]     # (TB, Lq, tk, Hp)
            slabs.append(jnp.sum(jnp.tanh(feats) * wv, axis=-1))  # (TB, Lq, tk)
        scores = slabs[0] if len(slabs) == 1 else jnp.concatenate(slabs, axis=-1)

        # ---- Softmax over keys. ----
        m = jnp.max(scores, axis=-1, keepdims=True)
        e = jnp.exp(scores - m)
        attn = e * pl.reciprocal(jnp.sum(e, axis=-1, keepdims=True), approx=True)

        # ---- Weighted sum of values + lane-dense output store. ----
        out = jnp.einsum("bqk,bkd->bqd", attn, v_ref[...],
                         preferred_element_type=jnp.float32)
        o_ref[0] = out.reshape(TB, Lq * Dv).astype(o_ref.dtype)

    return kernel


def _choose_batch_tile(B, Lq):
    # Keep >= 2 grid steps (both v7x TCs busy) while giving the projection
    # matmuls M = TB*Lq rows and capping per-step VMEM working set.
    if B < 2:
        return 1
    return max(1, min(B // 2, max(1, 256 // max(Lq, 1)), 16))


def _choose_key_tile(Lk, TB, Lq, Hp, budget_bytes=4 * 1024 * 1024):
    # Bound the live (TB, Lq, TK, Hp) f32 additive-feature slab.
    max_tk = max(1, budget_bytes // (TB * Lq * Hp * 4))
    if Lk <= max_tk:
        return Lk
    tk = max_tk
    while Lk % tk:  # largest divisor (no key padding -> softmax stays exact)
        tk -= 1
    return tk


def additive_attention(q, k, v, W_q, W_k, w_v):
    """q:(B,Lq,Dq) k:(B,Lk,Dk) v:(B,Lk,Dv); W_q:(H,Dq) W_k:(H,Dk) w_v:(1,H)."""
    B, Lq, Dq = q.shape
    _, Lk, Dk = k.shape
    Dv = v.shape[-1]
    H = W_q.shape[0]
    f32 = jnp.float32

    # Pad the hidden dim to full 128-lane vregs; zero-padded w_v keeps scores
    # exact (tanh(x) * 0 == 0).  Pre-transpose so the kernel does no .T.
    Hp = ((H + 127) // 128) * 128
    wq_t = jnp.zeros((Dq, Hp), f32).at[:, :H].set(W_q.astype(f32).T)
    wk_t = jnp.zeros((Dk, Hp), f32).at[:, :H].set(W_k.astype(f32).T)
    wv_p = jnp.zeros((1, Hp), f32).at[:, :H].set(w_v.astype(f32))

    TB = _choose_batch_tile(B, Lq)
    NB = pl.cdiv(B, TB)
    Bp = NB * TB
    if Bp != B:
        pad = Bp - B
        q = jnp.concatenate([q, jnp.zeros((pad, Lq, Dq), q.dtype)], axis=0)
        k = jnp.concatenate([k, jnp.zeros((pad, Lk, Dk), k.dtype)], axis=0)
        v = jnp.concatenate([v, jnp.zeros((pad, Lk, Dv), v.dtype)], axis=0)

    TK = _choose_key_tile(Lk, TB, Lq, Hp)

    grid_spec = pltpu.PrefetchScalarGridSpec(
        num_scalar_prefetch=0,
        grid=(NB,),
        in_specs=[
            pl.BlockSpec((TB, Lq, Dq), lambda b: (b, 0, 0)),
            pl.BlockSpec((TB, Lk, Dk), lambda b: (b, 0, 0)),
            pl.BlockSpec((TB, Lk, Dv), lambda b: (b, 0, 0)),
            pl.BlockSpec((Dq, Hp), lambda b: (0, 0)),
            pl.BlockSpec((Dk, Hp), lambda b: (0, 0)),
            pl.BlockSpec((1, Hp), lambda b: (0, 0)),
        ],
        out_specs=pl.BlockSpec((1, TB, Lq * Dv), lambda b: (b, 0, 0)),
    )

    out = pl.pallas_call(
        _make_additive_attn_kernel(TK),
        out_shape=jax.ShapeDtypeStruct((NB, TB, Lq * Dv), f32),
        grid_spec=grid_spec,
        compiler_params=pltpu.CompilerParams(dimension_semantics=("parallel",)),
    )(q.astype(f32), k.astype(f32), v.astype(f32), wq_t, wk_t, wv_p)

    return out.reshape(Bp, Lq, Dv)[:B]


def additive_attention_ref(q, k, v, W_q, W_k, w_v):
    qp = jnp.einsum("bqd,hd->bqh", q, W_q)
    kp = jnp.einsum("bkd,hd->bkh", k, W_k)
    feats = qp[:, :, None, :] + kp[:, None, :, :]
    scores = jnp.einsum("bqkh,h->bqk", jnp.tanh(feats), w_v[0])
    attn = jax.nn.softmax(scores, axis=-1)
    return jnp.einsum("bqk,bkd->bqd", attn, v)


if __name__ == "__main__":
    # Small, deterministic shapes consistent with the module.
    B, Lq, Lk = 2, 8, 8
    n_query, n_key, n_hidden, n_value = 32, 32, 32, 16

    key = jax.random.PRNGKey(0)
    kq, kk, kv, kwq, kwk, kwv = jax.random.split(key, 6)

    q = jax.random.normal(kq, (B, Lq, n_query), dtype=jnp.float32)
    k = jax.random.normal(kk, (B, Lk, n_key), dtype=jnp.float32)
    v = jax.random.normal(kv, (B, Lk, n_value), dtype=jnp.float32)

    # Deterministic parameter init (synthetic, nn.Linear weight layouts).
    W_q = jax.random.normal(kwq, (n_hidden, n_query), dtype=jnp.float32) * 0.1
    W_k = jax.random.normal(kwk, (n_hidden, n_key), dtype=jnp.float32) * 0.1
    w_v = jax.random.normal(kwv, (1, n_hidden), dtype=jnp.float32) * 0.1

    out = additive_attention(q, k, v, W_q, W_k, w_v)
    out = jax.block_until_ready(out)

    ref = additive_attention_ref(q, k, v, W_q, W_k, w_v)
    assert out.shape == (B, Lq, n_value)
    # Tolerance accounts for the approximate (EUP) softmax reciprocal.
    assert jnp.allclose(out, ref, atol=2e-3, rtol=2e-3), "mismatch vs reference"

    print("KERNEL_OK")
</pallas_src>

<mosaic_0001>
module attributes {stable_mosaic.version = 11 : i64} {
  func.func @kernel(%arg0: i32, %arg1: memref<1x8x32xf32, #tpu.memory_space<vmem>>, %arg2: memref<1x8x32xf32, #tpu.memory_space<vmem>>, %arg3: memref<1x8x16xf32, #tpu.memory_space<vmem>>, %arg4: memref<32x128xf32, #tpu.memory_space<vmem>>, %arg5: memref<32x128xf32, #tpu.memory_space<vmem>>, %arg6: memref<1x128xf32, #tpu.memory_space<vmem>>, %arg7: memref<1x1x128xf32, #tpu.memory_space<vmem>>) attributes {dimension_semantics = [#tpu.dimension_semantics<parallel>], iteration_bounds = array<i64: 2>, scalar_prefetch = 0 : i64, scratch_operands = 0 : i64, tpu.core_type = #tpu.core_type<tc>, window_params = [{transform_indices = @transform_0, window_bounds = array<i64: 1, 8, 32>}, {transform_indices = @transform_1, window_bounds = array<i64: 1, 8, 32>}, {transform_indices = @transform_2, window_bounds = array<i64: 1, 8, 16>}, {pipeline_mode = #tpu.pipeline_mode<synchronous>, transform_indices = @transform_3, window_bounds = array<i64: 32, 128>}, {pipeline_mode = #tpu.pipeline_mode<synchronous>, transform_indices = @transform_4, window_bounds = array<i64: 32, 128>}, {pipeline_mode = #tpu.pipeline_mode<synchronous>, transform_indices = @transform_5, window_bounds = array<i64: 1, 128>}, {transform_indices = @transform_6, window_bounds = array<i64: 1, 1, 128>}]} {
    %c0 = arith.constant 0 : index
    %c0_0 = arith.constant 0 : index
    %c0_1 = arith.constant 0 : index
    %0 = vector.load %arg1[%c0, %c0_0, %c0_1] : memref<1x8x32xf32, #tpu.memory_space<vmem>>, vector<1x8x32xf32>
    %1 = vector.shape_cast %0 : vector<1x8x32xf32> to vector<8x32xf32>
    %c0_2 = arith.constant 0 : index
    %c0_3 = arith.constant 0 : index
    %c0_4 = arith.constant 0 : index
    %2 = vector.load %arg2[%c0_2, %c0_3, %c0_4] : memref<1x8x32xf32, #tpu.memory_space<vmem>>, vector<1x8x32xf32>
    %3 = vector.shape_cast %2 : vector<1x8x32xf32> to vector<8x32xf32>
    %c0_5 = arith.constant 0 : index
    %c0_6 = arith.constant 0 : index
    %4 = vector.load %arg4[%c0_5, %c0_6] : memref<32x128xf32, #tpu.memory_space<vmem>>, vector<32x128xf32>
    %cst = arith.constant dense<0.000000e+00> : vector<8x128xf32>
    %5 = tpu.matmul %1, %4, %cst {dimension_numbers = #tpu.dot_dimension_numbers<[1], [0], [0], [1], [0, 0, 1, 1], [], []>} : vector<8x32xf32>, vector<32x128xf32>, vector<8x128xf32> -> vector<8x128xf32>
    %c0_7 = arith.constant 0 : index
    %c0_8 = arith.constant 0 : index
    %6 = vector.load %arg5[%c0_7, %c0_8] : memref<32x128xf32, #tpu.memory_space<vmem>>, vector<32x128xf32>
    %cst_9 = arith.constant dense<0.000000e+00> : vector<8x128xf32>
    %7 = tpu.matmul %3, %6, %cst_9 {dimension_numbers = #tpu.dot_dimension_numbers<[1], [0], [0], [1], [0, 0, 1, 1], [], []>} : vector<8x32xf32>, vector<32x128xf32>, vector<8x128xf32> -> vector<8x128xf32>
    %8 = vector.shape_cast %5 : vector<8x128xf32> to vector<1x8x128xf32>
    %9 = vector.shape_cast %7 : vector<8x128xf32> to vector<1x8x128xf32>
    %c0_10 = arith.constant 0 : index
    %c0_11 = arith.constant 0 : index
    %10 = vector.load %arg6[%c0_10, %c0_11] : memref<1x128xf32, #tpu.memory_space<vmem>>, vector<1x128xf32>
    %11 = vector.shape_cast %10 : vector<1x128xf32> to vector<128xf32>
    %12 = vector.shape_cast %8 : vector<1x8x128xf32> to vector<1x8x1x128xf32>
    %13 = vector.shape_cast %9 : vector<1x8x128xf32> to vector<1x1x8x128xf32>
    %14 = vector.broadcast %12 : vector<1x8x1x128xf32> to vector<1x8x8x128xf32>
    %15 = vector.broadcast %13 : vector<1x1x8x128xf32> to vector<1x8x8x128xf32>
    %16 = arith.addf %14, %15 : vector<1x8x8x128xf32>
    %17 = math.tanh %16 : vector<1x8x8x128xf32>
    %18 = vector.shape_cast %11 : vector<128xf32> to vector<1x1x1x128xf32>
    %19 = vector.broadcast %18 : vector<1x1x1x128xf32> to vector<1x8x8x128xf32>
    %20 = arith.mulf %17, %19 : vector<1x8x8x128xf32>
    %cst_12 = arith.constant dense<0.000000e+00> : vector<1x8x8xf32>
    %21 = vector.multi_reduction <add>, %20, %cst_12 [3] : vector<1x8x8x128xf32> to vector<1x8x8xf32>
    %cst_13 = arith.constant dense<0xFF800000> : vector<1x8xf32>
    %22 = vector.multi_reduction <maximumf>, %21, %cst_13 [2] : vector<1x8x8xf32> to vector<1x8xf32>
    %23 = vector.shape_cast %22 : vector<1x8xf32> to vector<1x8x1xf32>
    %24 = vector.broadcast %23 : vector<1x8x1xf32> to vector<1x8x8xf32>
    %25 = arith.subf %21, %24 : vector<1x8x8xf32>
    %26 = math.exp %25 : vector<1x8x8xf32>
    %cst_14 = arith.constant dense<0.000000e+00> : vector<1x8xf32>
    %27 = vector.multi_reduction <add>, %26, %cst_14 [2] : vector<1x8x8xf32> to vector<1x8xf32>
    %28 = vector.shape_cast %27 : vector<1x8xf32> to vector<1x8x1xf32>
    %29 = tpu.reciprocal %28 {approx = true} : vector<1x8x1xf32> -> vector<1x8x1xf32>
    %30 = vector.broadcast %29 : vector<1x8x1xf32> to vector<1x8x8xf32>
    %31 = arith.mulf %26, %30 : vector<1x8x8xf32>
    %c0_15 = arith.constant 0 : index
    %c0_16 = arith.constant 0 : index
    %c0_17 = arith.constant 0 : index
    %32 = vector.load %arg3[%c0_15, %c0_16, %c0_17] : memref<1x8x16xf32, #tpu.memory_space<vmem>>, vector<1x8x16xf32>
    "tpu.trace_start"() <{level = 10 : i32, message = "bqk,bkd->bqd"}> : () -> ()
    %cst_18 = arith.constant dense<0.000000e+00> : vector<1x8x16xf32>
    %33 = tpu.matmul %31, %32, %cst_18 {dimension_numbers = #tpu.dot_dimension_numbers<[2], [1], [1], [2], [0, 0, 0, 1, 1, 2], [0], [0]>} : vector<1x8x8xf32>, vector<1x8x16xf32>, vector<1x8x16xf32> -> vector<1x8x16xf32>
    "tpu.trace_stop"() : () -> ()
    %34 = vector.shape_cast %33 : vector<1x8x16xf32> to vector<1x128xf32>
    %c0_19 = arith.constant 0 : index
    %c0_20 = arith.constant 0 : index
    %c0_21 = arith.constant 0 : index
    %35 = vector.load %arg7[%c0_19, %c0_20, %c0_21] : memref<1x1x128xf32, #tpu.memory_space<vmem>>, vector<1x1x128xf32>
    %36 = vector.shape_cast %35 : vector<1x1x128xf32> to vector<1x128xf32>
    %37 = vector.shape_cast %34 : vector<1x128xf32> to vector<1x1x128xf32>
    tpu.vector_store %arg7[%c0_19, %c0_20, %c0_21], %37 {strides = array<i32>} : memref<1x1x128xf32, #tpu.memory_space<vmem>>, vector<1x1x128xf32>,
    return
  }
  func.func @transform_0(%arg0: i32) -> (i32, i32, i32) {
    %c0_i32 = arith.constant 0 : i32
    %c0_i32_0 = arith.constant 0 : i32
    %c0_i32_1 = arith.constant 0 : i32
    return %arg0, %c0_i32, %c0_i32_0 : i32, i32, i32
  }
  func.func @transform_1(%arg0: i32) -> (i32, i32, i32) {
    %c0_i32 = arith.constant 0 : i32
    %c0_i32_0 = arith.constant 0 : i32
    %c0_i32_1 = arith.constant 0 : i32
    return %arg0, %c0_i32, %c0_i32_0 : i32, i32, i32
  }
  func.func @transform_2(%arg0: i32) -> (i32, i32, i32) {
    %c0_i32 = arith.constant 0 : i32
    %c0_i32_0 = arith.constant 0 : i32
    %c0_i32_1 = arith.constant 0 : i32
    return %arg0, %c0_i32, %c0_i32_0 : i32, i32, i32
  }
  func.func @transform_3(%arg0: i32) -> (i32, i32) {
    %c0_i32 = arith.constant 0 : i32
    %c0_i32_0 = arith.constant 0 : i32
    %c0_i32_1 = arith.constant 0 : i32
    return %c0_i32, %c0_i32_0 : i32, i32
  }
  func.func @transform_4(%arg0: i32) -> (i32, i32) {
    %c0_i32 = arith.constant 0 : i32
    %c0_i32_0 = arith.constant 0 : i32
    %c0_i32_1 = arith.constant 0 : i32
    return %c0_i32, %c0_i32_0 : i32, i32
  }
  func.func @transform_5(%arg0: i32) -> (i32, i32) {
    %c0_i32 = arith.constant 0 : i32
    %c0_i32_0 = arith.constant 0 : i32
    %c0_i32_1 = arith.constant 0 : i32
    return %c0_i32, %c0_i32_0 : i32, i32
  }
  func.func @transform_6(%arg0: i32) -> (i32, i32, i32) {
    %c0_i32 = arith.constant 0 : i32
    %c0_i32_0 = arith.constant 0 : i32
    %c0_i32_1 = arith.constant 0 : i32
    return %arg0, %c0_i32, %c0_i32_0 : i32, i32, i32
  }
}

</mosaic_0001>

<llo_original>
// kernel: tpu_custom_call.1
$region0: #{tpu_custom_call.1}
  #allocation0 [shape = 'u32[]', space=smem, size = 0x4, offset = 0x4, fixed_abs, tag = 'smem constant byte address 0x4 - core index']
  #allocation1 [shape = 'u32[72,128]{1,0:T(1,128)}', space=vmem, size = 0x9000, scoped, tag = 'internal scratch']
  %s0 = inlined_call_operand.hbm [shape: f32[2,8,32], index: 0, kind: input, shape index: {}]
  %s1 = inlined_call_operand.hbm [shape: f32[2,8,32], index: 1, kind: input, shape index: {}]
  %s2 = inlined_call_operand.hbm [shape: f32[2,8,16], index: 2, kind: input, shape index: {}]
  %s3 = inlined_call_operand.hbm [shape: f32[32,128], index: 3, kind: input, shape index: {}]
  %s4 = inlined_call_operand.hbm [shape: f32[32,128], index: 4, kind: input, shape index: {}]
  %s5 = inlined_call_operand.vmem [shape: f32[1,128], index: 5, kind: input, shape index: {}]
  %s6 = inlined_call_operand.hbm [shape: f32[2,1,128], index: 6, kind: output, shape index: {}]
  %s7 = sld [smem:[#allocation0]]
  $region77: #{tpu_custom_call.1} parent=0
    _
  %s9 = ssub.s32 1, %s7
  %s10 = scalar_select 0, %s9, %s7
  $region1: #{tpu_custom_call.1} parent=0
    #allocation2 [shape = 'u8[8192]{0}', space=vmem, size = 0x2000, scoped, tag = 'input window, operand 0']
    #allocation3 [shape = 's32[2]{0}', space=sflag, size = 0x8, scoped, tag = 'scoped memory for tpu_custom_call.1']
    #allocation4 [shape = 's32[2]{0}', space=sflag, size = 0x8, scoped, tag = 'scoped memory for tpu_custom_call.1']
    #allocation5 [shape = 'u8[8192]{0}', space=vmem, size = 0x2000, scoped, tag = 'input window, operand 1']
    #allocation6 [shape = 's32[2]{0}', space=sflag, size = 0x8, scoped, tag = 'scoped memory for tpu_custom_call.1']
    #allocation7 [shape = 'u8[8192]{0}', space=vmem, size = 0x2000, scoped, tag = 'input window, operand 2']
    #allocation8 [shape = 'u8[16384]{0}', space=vmem, size = 0x4000, scoped, tag = 'input window, operand 3, single buffered']
    #allocation9 [shape = 's32[1]{0}', space=sflag, size = 0x4, scoped, tag = 'scoped memory for tpu_custom_call.1']
    #allocation10 [shape = 'u8[16384]{0}', space=vmem, size = 0x4000, scoped, tag = 'input window, operand 4, single buffered']
    #allocation11 [shape = 'u8[1024]{0}', space=vmem, size = 0x400, scoped, tag = 'output window, operand 0']
    %11 = vsyncpa [#allocation3], 0
    %s12 = scalar_lea.sflag [#allocation3], 1
    %13 = vsyncpa %s12, 0
    %14 = vsyncpa [#allocation6], 0
    %s15 = scalar_lea.sflag [#allocation6], 1
    %16 = vsyncpa %s15, 0
    %17 = vsyncpa [#allocation9], 0
    %18 = vsyncpa [#allocation4], 0
    %s19 = scalar_lea.sflag [#allocation4], 1
    %20 = vsyncpa %s19, 0
    loop: start=0, step=1, limit=4
    $region2: #{tpu_custom_call.1} parent=1 // loop_pre_header
      _
    $region3: #{tpu_custom_call.1} parent=1 // loop_header
      %s22 = sphi 0, %s26
      %p23 = scmp.ge.s32.totalorder %s22, 4
      %s32 = sphi 0, %s34
      %s35 = sphi 0, %s32
      %s36 = sphi 0, %s35
      %s52 = sphi 0, %s36
      %s58 = sphi 0, %s60
      %s61 = sphi 0, %s58
      %s62 = sphi 0, %s61
      %s78 = sphi 0, %s62
      %s84 = sphi 0, %s86
      %s87 = sphi 0, %s84
      %s88 = sphi 0, %s87
      %s104 = sphi 0, %s88
      %s108 = sphi 0, %s108
      %s110 = sphi 0, %s108
      %s111 = sphi 0, %s110
      %s125 = sphi 0, %s111
      %s129 = sphi 0, %s129
      %s131 = sphi 0, %s129
      %s132 = sphi 0, %s131
      %s146 = sphi 0, %s132
      %s150 = sphi 0, %s150
      %s152 = sphi 0, %s150
      %s153 = sphi 0, %s152
      %s167 = sphi 0, %s153
      %s173 = sphi 0, %s175
      %s176 = sphi 0, %s173
      %s177 = sphi 0, %s176
      %s193 = sphi 0, %s177
    $region4: #{tpu_custom_call.1} parent=1 // loop_header_branch
      %25 = sbr.rel (%p23) target = $region8
    $region5: #{tpu_custom_call.1} parent=1 // loop_body
      %s27 = ssub.s32 %s22, 1
      %s28 = ssub.s32 %s22, 2
      %s29 = sadd.s32 %s22, 1
      %s30 = ssub.s32 %s22, %s29
      %p31 = scmp.eq.s32.totalorder %s30, 0
      %s33 = sadd.s32 %s32, 1
      %s34 = scalar_select %p31, %s32, %s33
      %p37 = pneg %p31
      %p38 = scmp.eq.s32.totalorder %s22, 1
      %p39 = por %p37, %p38
      %p40 = scmp.ne.s32.totalorder %s32, %s35
      %p41 = scmp.eq.s32.totalorder %s22, 0
      %p42 = por %p40, %p41
      %p43 = scmp.ne.s32.totalorder %s32, %s35
      %p44 = scmp.eq.s32.totalorder %s27, 1
      %p45 = por %p43, %p44
      %p46 = scmp.ne.s32.totalorder %s35, %s36
      %p47 = scmp.eq.s32.totalorder %s27, 0
      %p48 = por %p46, %p47
      %p49 = scmp.ne.s32.totalorder %s35, %s36
      %p50 = scmp.eq.s32.totalorder %s28, 1
      %p51 = por %p49, %p50
      %p53 = scmp.ne.s32.totalorder %s36, %s52
      %p54 = scmp.eq.s32.totalorder %s28, 0
      %p55 = por %p53, %p54
      %s56 = ssub.s32 %s22, %s29
      %p57 = scmp.eq.s32.totalorder %s56, 0
      %s59 = sadd.s32 %s58, 1
      %s60 = scalar_select %p57, %s58, %s59
      %p63 = pneg %p57
      %p64 = scmp.eq.s32.totalorder %s22, 1
      %p65 = por %p63, %p64
      %p66 = scmp.ne.s32.totalorder %s58, %s61
      %p67 = scmp.eq.s32.totalorder %s22, 0
      %p68 = por %p66, %p67
      %p69 = scmp.ne.s32.totalorder %s58, %s61
      %p70 = scmp.eq.s32.totalorder %s27, 1
      %p71 = por %p69, %p70
      %p72 = scmp.ne.s32.totalorder %s61, %s62
      %p73 = scmp.eq.s32.totalorder %s27, 0
      %p74 = por %p72, %p73
      %p75 = scmp.ne.s32.totalorder %s61, %s62
      %p76 = scmp.eq.s32.totalorder %s28, 1
      %p77 = por %p75, %p76
      %p79 = scmp.ne.s32.totalorder %s62, %s78
      %p80 = scmp.eq.s32.totalorder %s28, 0
      %p81 = por %p79, %p80
      %s82 = ssub.s32 %s22, %s29
      %p83 = scmp.eq.s32.totalorder %s82, 0
      %s85 = sadd.s32 %s84, 1
      %s86 = scalar_select %p83, %s84, %s85
      %p89 = pneg %p83
      %p90 = scmp.eq.s32.totalorder %s22, 1
      %p91 = por %p89, %p90
      %p92 = scmp.ne.s32.totalorder %s84, %s87
      %p93 = scmp.eq.s32.totalorder %s22, 0
      %p94 = por %p92, %p93
      %p95 = scmp.ne.s32.totalorder %s84, %s87
      %p96 = scmp.eq.s32.totalorder %s27, 1
      %p97 = por %p95, %p96
      %p98 = scmp.ne.s32.totalorder %s87, %s88
      %p99 = scmp.eq.s32.totalorder %s27, 0
      %p100 = por %p98, %p99
      %p101 = scmp.ne.s32.totalorder %s87, %s88
      %p102 = scmp.eq.s32.totalorder %s28, 1
      %p103 = por %p101, %p102
      %p105 = scmp.ne.s32.totalorder %s88, %s104
      %p106 = scmp.eq.s32.totalorder %s28, 0
      %p107 = por %p105, %p106
      %s109 = sadd.s32 %s108, 1
      %p112 = scmp.eq.s32.totalorder %s22, 1
      %p113 = scmp.ne.s32.totalorder %s108, %s110
      %p114 = scmp.eq.s32.totalorder %s22, 0
      %p115 = por %p113, %p114
      %p116 = scmp.ne.s32.totalorder %s108, %s110
      %p117 = scmp.eq.s32.totalorder %s27, 1
      %p118 = por %p116, %p117
      %p119 = scmp.ne.s32.totalorder %s110, %s111
      %p120 = scmp.eq.s32.totalorder %s27, 0
      %p121 = por %p119, %p120
      %p122 = scmp.ne.s32.totalorder %s110, %s111
      %p123 = scmp.eq.s32.totalorder %s28, 1
      %p124 = por %p122, %p123
      %p126 = scmp.ne.s32.totalorder %s111, %s125
      %p127 = scmp.eq.s32.totalorder %s28, 0
      %p128 = por %p126, %p127
      %s130 = sadd.s32 %s129, 1
      %p133 = scmp.eq.s32.totalorder %s22, 1
      %p134 = scmp.ne.s32.totalorder %s129, %s131
      %p135 = scmp.eq.s32.totalorder %s22, 0
      %p136 = por %p134, %p135
      %p137 = scmp.ne.s32.totalorder %s129, %s131
      %p138 = scmp.eq.s32.totalorder %s27, 1
      %p139 = por %p137, %p138
      %p140 = scmp.ne.s32.totalorder %s131, %s132
      %p141 = scmp.eq.s32.totalorder %s27, 0
      %p142 = por %p140, %p141
      %p143 = scmp.ne.s32.totalorder %s131, %s132
      %p144 = scmp.eq.s32.totalorder %s28, 1
      %p145 = por %p143, %p144
      %p147 = scmp.ne.s32.totalorder %s132, %s146
      %p148 = scmp.eq.s32.totalorder %s28, 0
      %p149 = por %p147, %p148
      %s151 = sadd.s32 %s150, 1
      %p154 = scmp.eq.s32.totalorder %s22, 1
      %p155 = scmp.ne.s32.totalorder %s150, %s152
      %p156 = scmp.eq.s32.totalorder %s22, 0
      %p157 = por %p155, %p156
      %p158 = scmp.ne.s32.totalorder %s150, %s152
      %p159 = scmp.eq.s32.totalorder %s27, 1
      %p160 = por %p158, %p159
      %p161 = scmp.ne.s32.totalorder %s152, %s153
      %p162 = scmp.eq.s32.totalorder %s27, 0
      %p163 = por %p161, %p162
      %p164 = scmp.ne.s32.totalorder %s152, %s153
      %p165 = scmp.eq.s32.totalorder %s28, 1
      %p166 = por %p164, %p165
      %p168 = scmp.ne.s32.totalorder %s153, %s167
      %p169 = scmp.eq.s32.totalorder %s28, 0
      %p170 = por %p168, %p169
      %s171 = ssub.s32 %s22, %s29
      %p172 = scmp.eq.s32.totalorder %s171, 0
      %s174 = sadd.s32 %s173, 1
      %s175 = scalar_select %p172, %s173, %s174
      %p178 = pneg %p172
      %p179 = scmp.eq.s32.totalorder %s22, 1
      %p180 = por %p178, %p179
      %p181 = scmp.ne.s32.totalorder %s173, %s176
      %p182 = scmp.eq.s32.totalorder %s22, 0
      %p183 = por %p181, %p182
      %p184 = scmp.ne.s32.totalorder %s173, %s176
      %p185 = scmp.eq.s32.totalorder %s27, 1
      %p186 = por %p184, %p185
      %p187 = scmp.ne.s32.totalorder %s176, %s177
      %p188 = scmp.eq.s32.totalorder %s27, 0
      %p189 = por %p187, %p188
      %p190 = scmp.ne.s32.totalorder %s176, %s177
      %p191 = scmp.eq.s32.totalorder %s28, 1
      %p192 = por %p190, %p191
      %p194 = scmp.ne.s32.totalorder %s177, %s193
      %p195 = scmp.eq.s32.totalorder %s28, 0
      %p196 = por %p194, %p195
      %p197 = scmp.le.s32.totalorder 1, %s22
      %p198 = scmp.lt.s32.totalorder %s22, 3
      %p199 = pnand %p197, %p198
      %p200 = pneg %p199
      // Predicated region
      $region9: #{tpu_custom_call.1} parent=5 // pred_check
        _
      $region10: #{tpu_custom_call.1} parent=5 // pred_check_branch
        %202 = sbr.rel (%p199) target = $region12
      $region11: #{tpu_custom_call.1} parent=5 // pred_region
        %s203 = ssub.s32 %s22, 1
        // Predicated region
        $region13: #{tpu_custom_call.1} parent=11 // pred_check
          %p204 = pneg %p121
        $region14: #{tpu_custom_call.1} parent=11 // pred_check_branch
          %206 = sbr.rel (%p204) target = $region16
        $region15: #{tpu_custom_call.1} parent=11 // pred_region
          %208 = vsyncadd [#allocation9], 0
          %s209 = sshll.u32 %s3, 4
          %s210 = int_to_ptr.hbm [resolvable:$true] %s209
          %s211 = sshll.u32 [#allocation8], 4
          %s212 = int_to_ptr.vmem [resolvable:$true] %s211
          %217 = dma.hbm_to_vmem [thread:$0]  %s210, 512, %s212, [#allocation9], 128, 128, 8
        $region16: #{tpu_custom_call.1} parent=11 // pred_fallthru
          _
        // Predicated region
        $region17: #{tpu_custom_call.1} parent=11 // pred_check
          %p218 = pneg %p142
        $region18: #{tpu_custom_call.1} parent=11 // pred_check_branch
          %220 = sbr.rel (%p218) target = $region20
        $region19: #{tpu_custom_call.1} parent=11 // pred_region
          %222 = vsyncadd [#allocation9], 0
          %s223 = sshll.u32 %s4, 4
          %s224 = int_to_ptr.hbm [resolvable:$true] %s223
          %s225 = sshll.u32 [#allocation10], 4
          %s226 = int_to_ptr.vmem [resolvable:$true] %s225
          %231 = dma.hbm_to_vmem [thread:$0]  %s224, 512, %s226, [#allocation9], 128, 128, 8
        $region20: #{tpu_custom_call.1} parent=11 // pred_fallthru
          _
        // Predicated region
        $region21: #{tpu_custom_call.1} parent=11 // pred_check
          %p232 = pneg %p163
        $region22: #{tpu_custom_call.1} parent=11 // pred_check_branch
          %234 = sbr.rel (%p232) target = $region24
        $region23: #{tpu_custom_call.1} parent=11 // pred_region
          _
        $region24: #{tpu_custom_call.1} parent=11 // pred_fallthru
          _
      $region12: #{tpu_custom_call.1} parent=5 // pred_fallthru
        _
      %p235 = scmp.lt.s32.totalorder %s22, 2
      // Predicated region
      $region25: #{tpu_custom_call.1} parent=5 // pred_check
        %p236 = pneg %p235
      $region26: #{tpu_custom_call.1} parent=5 // pred_check_branch
        %238 = sbr.rel (%p236) target = $region28
      $region27: #{tpu_custom_call.1} parent=5 // pred_region
        // Predicated region
        $region29: #{tpu_custom_call.1} parent=27 // pred_check
          %p239 = pneg %p42
        $region30: #{tpu_custom_call.1} parent=27 // pred_check_branch
          %241 = sbr.rel (%p239) target = $region32
        $region31: #{tpu_custom_call.1} parent=27 // pred_region
          %s242 = sand.u32 %s32, 1
          %s243 = scalar_lea.sflag [#allocation3], %s242
          %s244 = sand.u32 %s32, 1
          %s245 = smul.addr %s244, 8
          %s246 = scalar_lea.vmem [#allocation2], %s245
          %248 = vsyncadd %s243, 0
          %s249 = smul.addr %s22, 8
          %s250 = scalar_lea.hbm %s0, %s249
          %s252 = sshll.u32 %s250, 4
          %s253 = int_to_ptr.hbm [resolvable:$true] %s252
          %s254 = sshll.u32 %s246, 4
          %s255 = int_to_ptr.vmem [resolvable:$true] %s254
          %257 = dma.hbm_to_vmem [thread:$0]  %s253, 128, %s255, %s243
        $region32: #{tpu_custom_call.1} parent=27 // pred_fallthru
          _
        // Predicated region
        $region33: #{tpu_custom_call.1} parent=27 // pred_check
          %p258 = pneg %p68
        $region34: #{tpu_custom_call.1} parent=27 // pred_check_branch
          %260 = sbr.rel (%p258) target = $region36
        $region35: #{tpu_custom_call.1} parent=27 // pred_region
          %s261 = sand.u32 %s22, 1
          %s262 = scalar_lea.sflag [#allocation6], %s261
          %s263 = sand.u32 %s58, 1
          %s264 = smul.addr %s263, 8
          %s265 = scalar_lea.vmem [#allocation5], %s264
          %267 = vsyncadd %s262, 0
          %s268 = smul.addr %s22, 8
          %s269 = scalar_lea.hbm %s1, %s268
          %s271 = sshll.u32 %s269, 4
          %s272 = int_to_ptr.hbm [resolvable:$true] %s271
          %s273 = sshll.u32 %s265, 4
          %s274 = int_to_ptr.vmem [resolvable:$true] %s273
          %276 = dma.hbm_to_vmem [thread:$0]  %s272, 128, %s274, %s262
        $region36: #{tpu_custom_call.1} parent=27 // pred_fallthru
          _
        // Predicated region
        $region37: #{tpu_custom_call.1} parent=27 // pred_check
          %p277 = pneg %p94
        $region38: #{tpu_custom_call.1} parent=27 // pred_check_branch
          %279 = sbr.rel (%p277) target = $region40
        $region39: #{tpu_custom_call.1} parent=27 // pred_region
          %s280 = sand.u32 %s22, 1
          %s281 = scalar_lea.sflag [#allocation6], %s280
          %s282 = sand.u32 %s84, 1
          %s283 = smul.addr %s282, 8
          %s284 = scalar_lea.vmem [#allocation7], %s283
          %286 = vsyncadd %s281, 0
          %s287 = smul.addr %s22, 8
          %s288 = scalar_lea.hbm %s2, %s287
          %s290 = sshll.u32 %s288, 4
          %s291 = int_to_ptr.hbm [resolvable:$true] %s290
          %s292 = sshll.u32 %s284, 4
          %s293 = int_to_ptr.vmem [resolvable:$true] %s292
          %295 = dma.hbm_to_vmem [thread:$0]  %s291, 128, %s293, %s281
        $region40: #{tpu_custom_call.1} parent=27 // pred_fallthru
          _
      $region28: #{tpu_custom_call.1} parent=5 // pred_fallthru
        _
      %p296 = scmp.le.s32.totalorder 1, %s22
      %p297 = scmp.lt.s32.totalorder %s22, 3
      %p298 = pnand %p296, %p297
      %p299 = pneg %p298
      // Predicated region
      $region41: #{tpu_custom_call.1} parent=5 // pred_check
        _
      $region42: #{tpu_custom_call.1} parent=5 // pred_check_branch
        %301 = sbr.rel (%p298) target = $region44
      $region43: #{tpu_custom_call.1} parent=5 // pred_region
        %s302 = ssub.s32 %s22, 1
        %s303 = sand.u32 %s35, 1
        %s304 = scalar_lea.sflag [#allocation3], %s303
        %s305 = sand.u32 %s35, 1
        %s306 = smul.addr %s305, 8
        %s307 = scalar_lea.vmem [#allocation2], %s306
        // Predicated region
        $region45: #{tpu_custom_call.1} parent=43 // pred_check
          %p308 = pneg %p48
        $region46: #{tpu_custom_call.1} parent=43 // pred_check_branch
          %310 = sbr.rel (%p308) target = $region48
        $region47: #{tpu_custom_call.1} parent=43 // pred_region
          %312 = dma.done %s304, 128
        $region48: #{tpu_custom_call.1} parent=43 // pred_fallthru
          _
        %s313 = sand.u32 %s27, 1
        %s314 = scalar_lea.sflag [#allocation6], %s313
        %s315 = sand.u32 %s61, 1
        %s316 = smul.addr %s315, 8
        %s317 = scalar_lea.vmem [#allocation5], %s316
        // Predicated region
        $region49: #{tpu_custom_call.1} parent=43 // pred_check
          %p318 = pneg %p74
        $region50: #{tpu_custom_call.1} parent=43 // pred_check_branch
          %320 = sbr.rel (%p318) target = $region52
        $region51: #{tpu_custom_call.1} parent=43 // pred_region
          %322 = dma.done %s314, 128
        $region52: #{tpu_custom_call.1} parent=43 // pred_fallthru
          _
        %s323 = sand.u32 %s27, 1
        %s324 = scalar_lea.sflag [#allocation6], %s323
        %s325 = sand.u32 %s87, 1
        %s326 = smul.addr %s325, 8
        %s327 = scalar_lea.vmem [#allocation7], %s326
        // Predicated region
        $region53: #{tpu_custom_call.1} parent=43 // pred_check
          %p328 = pneg %p100
        $region54: #{tpu_custom_call.1} parent=43 // pred_check_branch
          %330 = sbr.rel (%p328) target = $region56
        $region55: #{tpu_custom_call.1} parent=43 // pred_region
          %332 = dma.done %s324, 128
        $region56: #{tpu_custom_call.1} parent=43 // pred_fallthru
          _
        // Predicated region
        $region57: #{tpu_custom_call.1} parent=43 // pred_check
          %p333 = pneg %p121
        $region58: #{tpu_custom_call.1} parent=43 // pred_check_branch
          %335 = sbr.rel (%p333) target = $region60
        $region59: #{tpu_custom_call.1} parent=43 // pred_region
          %337 = dma.done [#allocation9], 512
        $region60: #{tpu_custom_call.1} parent=43 // pred_fallthru
          _
        // Predicated region
        $region61: #{tpu_custom_call.1} parent=43 // pred_check
          %p338 = pneg %p142
        $region62: #{tpu_custom_call.1} parent=43 // pred_check_branch
          %340 = sbr.rel (%p338) target = $region64
        $region63: #{tpu_custom_call.1} parent=43 // pred_region
          %342 = dma.done [#allocation9], 512
        $region64: #{tpu_custom_call.1} parent=43 // pred_fallthru
          _
        %s343 = sand.u32 %s35, 1
        %s344 = scalar_lea.sflag [#allocation3], %s343
        %s345 = sand.u32 %s35, 1
        %s346 = smul.addr %s345, 8
        %s347 = scalar_lea.vmem [#allocation2], %s346
        %p348 = pneg %p48
        %p349 = pneg %p45
        %s350 = sand.u32 %s27, 1
        %s351 = scalar_lea.sflag [#allocation6], %s350
        %s352 = sand.u32 %s61, 1
        %s353 = smul.addr %s352, 8
        %s354 = scalar_lea.vmem [#allocation5], %s353
        %p355 = pneg %p74
        %p356 = pneg %p71
        %s357 = sand.u32 %s27, 1
        %s358 = scalar_lea.sflag [#allocation6], %s357
        %s359 = sand.u32 %s87, 1
        %s360 = smul.addr %s359, 8
        %s361 = scalar_lea.vmem [#allocation7], %s360
        %p362 = pneg %p100
        %p363 = pneg %p97
        %p364 = pneg %p121
        %p365 = pneg %p118
        %p366 = pneg %p142
        %p367 = pneg %p139
        %p368 = pneg %p163
        %p369 = pneg %p160
        %p370 = pneg %p189
        %p371 = pneg %p186
        %s372 = sand.u32 %s176, 1
        %s373 = scalar_lea.sflag [#allocation4], %s372
        %s374 = sand.u32 %s176, 1
        %s375 = scalar_lea.vmem [#allocation11], %s374
        %v376 = vld [vmem:[%s307] sm:$0xff]
        %v377 = vld [vmem:[%s317] sm:$0xff]
        %v378 = vld [vmem:[#allocation8] sm:$0xff]
        %v379 = vld [vmem:[#allocation8 + $0x8] sm:$0xff]
        %v380 = vld [vmem:[#allocation8 + $0x10] sm:$0xff]
        %v381 = vld [vmem:[#allocation8 + $0x18] sm:$0xff]
        %vm382 = vcmask 261120
        %v384 = vsel %vm382, %v376, 0
        %386 = vmatpush.msra.mxu0 0.0
        %387 = vmatpush.msra.mxu0 0.0
        %388 = vmatpush.msra.mxu0 0.0
        %389 = vmatpush.msra.mxu0 0.0
        %390 = vmatpush.msra.mxu0 0.0
        %391 = vmatpush.msra.mxu0 0.0
        %392 = vmatpush.msra.mxu0 0.0
        %393 = vmatpush.msra.mxu0 0.0
        %394 = vmatpush.msra.mxu0 0.0
        %395 = vmatpush.msra.mxu0 0.0
        %396 = vmatpush.msra.mxu0 0.0
        %397 = vmatpush.msra.mxu0 0.0
        %398 = vmatpush.msra.mxu0 %v381
        %399 = vmatpush.msra.mxu0 %v380
        %400 = vmatpush.msra.mxu0 %v379
        %401 = vmatpush.msra.mxu0 %v378
        %402 = vmatmul.f32.gmra.mxu0 %v384
        %v403 = vpop.f32.mrf.mxu0
        %v404 = vadd.f32 0.0, %v403
        %405 = vdwg.mxu0
        %v406 = vld [vmem:[#allocation10] sm:$0xff]
        %v407 = vld [vmem:[#allocation10 + $0x8] sm:$0xff]
        %v408 = vld [vmem:[#allocation10 + $0x10] sm:$0xff]
        %v409 = vld [vmem:[#allocation10 + $0x18] sm:$0xff]
        %v411 = vsel %vm382, %v377, 0
        %413 = vmatpush.msra.mxu0 0.0
        %414 = vmatpush.msra.mxu0 0.0
        %415 = vmatpush.msra.mxu0 0.0
        %416 = vmatpush.msra.mxu0 0.0
        %417 = vmatpush.msra.mxu0 0.0
        %418 = vmatpush.msra.mxu0 0.0
        %419 = vmatpush.msra.mxu0 0.0
        %420 = vmatpush.msra.mxu0 0.0
        %421 = vmatpush.msra.mxu0 0.0
        %422 = vmatpush.msra.mxu0 0.0
        %423 = vmatpush.msra.mxu0 0.0
        %424 = vmatpush.msra.mxu0 0.0
        %425 = vmatpush.msra.mxu0 %v409
        %426 = vmatpush.msra.mxu0 %v408
        %427 = vmatpush.msra.mxu0 %v407
        %428 = vmatpush.msra.mxu0 %v406
        %429 = vmatmul.f32.gmra.mxu0 %v411
        %v430 = vpop.f32.mrf.mxu0
        %v431 = vadd.f32 0.0, %v430
        %432 = vdwg.mxu0
        %v433 = vld [vmem:[%s5] sm:$0x1]
        %v435 = vrot.slane %v404, 1
        %v436 = vrot.slane %v404, 2
        %v437 = vrot.slane %v404, 3
        %v438 = vrot.slane %v404, 4
        %v439 = vrot.slane %v404, 5
        %v440 = vrot.slane %v404, 6
        %v441 = vrot.slane %v404, 7
        %v442 = vperm.slane %v404, 0
        %v443 = vperm.slane %v435, 0
        %v444 = vperm.slane %v436, 0
        %v445 = vperm.slane %v437, 0
        %v446 = vperm.slane %v438, 0
        %v447 = vperm.slane %v439, 0
        %v448 = vperm.slane %v440, 0
        %v449 = vperm.slane %v441, 0
        %v458 = vadd.f32 %v442, %v431
        %v459 = vadd.f32 %v443, %v431
        %v460 = vadd.f32 %v444, %v431
        %v461 = vadd.f32 %v445, %v431
        %v462 = vadd.f32 %v446, %v431
        %v463 = vadd.f32 %v447, %v431
        %v464 = vadd.f32 %v448, %v431
        %v465 = vadd.f32 %v449, %v431
        %v466 = vtanh.pop %v458
        %v467 = vtanh.pop %v459
        %v468 = vtanh.pop %v460
        %v469 = vtanh.pop %v461
        %v470 = vtanh.pop %v462
        %v471 = vtanh.pop %v463
        %v472 = vtanh.pop %v464
        %v473 = vtanh.pop %v465
        %v475 = vperm.slane %v433, 0
        %v477 = vmul.f32 %v466, %v475
        %v478 = vmul.f32 %v467, %v475
        %v479 = vmul.f32 %v468, %v475
        %v480 = vmul.f32 %v469, %v475
        %v481 = vmul.f32 %v470, %v475
        %v482 = vmul.f32 %v471, %v475
        %v483 = vmul.f32 %v472, %v475
        %v484 = vmul.f32 %v473, %v475
        %485 = vadd.xlane.f32.xlu0 %v477
        %v486 = vpop.xlane.xlu0 %485
        %487 = vadd.xlane.f32.xlu0 %v478
        %v488 = vpop.xlane.xlu0 %487
        %489 = vadd.xlane.f32.xlu0 %v479
        %v490 = vpop.xlane.xlu0 %489
        %491 = vadd.xlane.f32.xlu0 %v480
        %v492 = vpop.xlane.xlu0 %491
        %493 = vadd.xlane.f32.xlu0 %v481
        %v494 = vpop.xlane.xlu0 %493
        %495 = vadd.xlane.f32.xlu0 %v482
        %v496 = vpop.xlane.xlu0 %495
        %497 = vadd.xlane.f32.xlu0 %v483
        %v498 = vpop.xlane.xlu0 %497
        %499 = vadd.xlane.f32.xlu0 %v484
        %v500 = vpop.xlane.xlu0 %499
        %v509 = vlaneseq
        %v510 = vand.u32 %v509, 127
        %v511 = vperm.slane %v486, %v510
        %v512 = vperm.slane %v488, %v510
        %v513 = vperm.slane %v490, %v510
        %v514 = vperm.slane %v492, %v510
        %v515 = vperm.slane %v494, %v510
        %v516 = vperm.slane %v496, %v510
        %v517 = vperm.slane %v498, %v510
        %v518 = vperm.slane %v500, %v510
        %vm519 = vcmask 1041409
        %v520 = vsel %vm519, %v512, %v511
        %vm521 = vcmask 1042434
        %v522 = vsel %vm521, %v513, %v520
        %vm523 = vcmask 1043459
        %v524 = vsel %vm523, %v514, %v522
        %vm525 = vcmask 1044484
        %v526 = vsel %vm525, %v515, %v524
        %vm527 = vcmask 1045509
        %v528 = vsel %vm527, %v516, %v526
        %vm529 = vcmask 1046534
        %v530 = vsel %vm529, %v517, %v528
        %vm531 = vcmask 1047559
        %v532 = vsel %vm531, %v518, %v530
        %vm534 = vcmask 64512
        %v535 = vsel %vm534, %v532, -inf
        %536 = vmax.xlane.f32.xlu0 %v535
        %v537 = vpop.xlane.xlu0 %536
        %v539 = vperm.slane %v537, 0
        %v540 = vperm.slane %v537, 1
        %v541 = vperm.slane %v537, 2
        %v542 = vperm.slane %v537, 3
        %v543 = vperm.slane %v537, 4
        %v544 = vperm.slane %v537, 5
        %v545 = vperm.slane %v537, 6
        %v546 = vperm.slane %v537, 7
        %v555 = vsub.f32 %v486, %v539
        %v556 = vsub.f32 %v488, %v540
        %v557 = vsub.f32 %v490, %v541
        %v558 = vsub.f32 %v492, %v542
        %v559 = vsub.f32 %v494, %v543
        %v560 = vsub.f32 %v496, %v544
        %v561 = vsub.f32 %v498, %v545
        %v562 = vsub.f32 %v500, %v546
        %v563 = vmul.f32 %v555, 1.442695
        %v564 = vpow.pop %v563
        %v565 = vmul.f32 %v556, 1.442695
        %v566 = vpow.pop %v565
        %v567 = vmul.f32 %v557, 1.442695
        %v568 = vpow.pop %v567
        %v569 = vmul.f32 %v558, 1.442695
        %v570 = vpow.pop %v569
        %v571 = vmul.f32 %v559, 1.442695
        %v572 = vpow.pop %v571
        %v573 = vmul.f32 %v560, 1.442695
        %v574 = vpow.pop %v573
        %v575 = vmul.f32 %v561, 1.442695
        %v576 = vpow.pop %v575
        %v577 = vmul.f32 %v562, 1.442695
        %v578 = vpow.pop %v577
        %587 = vset.pattern.permute.xlu0 0
        %588 = vperm.xlu0 %587, %v564
        %v589 = vpop.permute.xlu0 %588
        %590 = vset.pattern.permute.xlu0 0
        %591 = vperm.xlu0 %590, %v566
        %v592 = vpop.permute.xlu0 %591
        %593 = vset.pattern.permute.xlu0 0
        %594 = vperm.xlu0 %593, %v568
        %v595 = vpop.permute.xlu0 %594
        %596 = vset.pattern.permute.xlu0 0
        %597 = vperm.xlu0 %596, %v570
        %v598 = vpop.permute.xlu0 %597
        %599 = vset.pattern.permute.xlu0 0
        %600 = vperm.xlu0 %599, %v572
        %v601 = vpop.permute.xlu0 %600
        %602 = vset.pattern.permute.xlu0 0
        %603 = vperm.xlu0 %602, %v574
        %v604 = vpop.permute.xlu0 %603
        %605 = vset.pattern.permute.xlu0 0
        %606 = vperm.xlu0 %605, %v576
        %v607 = vpop.permute.xlu0 %606
        %608 = vset.pattern.permute.xlu0 0
        %609 = vperm.xlu0 %608, %v578
        %v610 = vpop.permute.xlu0 %609
        %v611 = vperm.slane %v589, %v510
        %v612 = vperm.slane %v592, %v510
        %v613 = vperm.slane %v595, %v510
        %v614 = vperm.slane %v598, %v510
        %v615 = vperm.slane %v601, %v510
        %v616 = vperm.slane %v604, %v510
        %v617 = vperm.slane %v607, %v510
        %v618 = vperm.slane %v610, %v510
        %v619 = vsel %vm519, %v612, %v611
        %v620 = vsel %vm521, %v613, %v619
        %v621 = vsel %vm523, %v614, %v620
        %v622 = vsel %vm525, %v615, %v621
        %v623 = vsel %vm527, %v616, %v622
        %v624 = vsel %vm529, %v617, %v623
        %v625 = vsel %vm531, %v618, %v624
        %v627 = vsel %vm534, %v625, 0.0
        %628 = vadd.xlane.f32.xlu0 %v627
        %v629 = vpop.xlane.xlu0 %628
        %v630 = vrcp.pop %v629
        %v632 = vperm.slane %v630, 0
        %v633 = vperm.slane %v630, 1
        %v634 = vperm.slane %v630, 2
        %v635 = vperm.slane %v630, 3
        %v636 = vperm.slane %v630, 4
        %v637 = vperm.slane %v630, 5
        %v638 = vperm.slane %v630, 6
        %v639 = vperm.slane %v630, 7
        %v648 = vmul.f32 %v564, %v632
        %v649 = vmul.f32 %v566, %v633
        %v650 = vmul.f32 %v568, %v634
        %v651 = vmul.f32 %v570, %v635
        %v652 = vmul.f32 %v572, %v636
        %v653 = vmul.f32 %v574, %v637
        %v654 = vmul.f32 %v576, %v638
        %v655 = vmul.f32 %v578, %v639
        %v656 = vld [vmem:[%s327] sm:$0xff]
        %665 = vset.pattern.permute.xlu0 0
        %666 = vperm.xlu0 %665, %v648
        %v667 = vpop.permute.xlu0 %666
        %668 = vset.pattern.permute.xlu0 0
        %669 = vperm.xlu0 %668, %v649
        %v670 = vpop.permute.xlu0 %669
        %671 = vset.pattern.permute.xlu0 0
        %672 = vperm.xlu0 %671, %v650
        %v673 = vpop.permute.xlu0 %672
        %674 = vset.pattern.permute.xlu0 0
        %675 = vperm.xlu0 %674, %v651
        %v676 = vpop.permute.xlu0 %675
        %677 = vset.pattern.permute.xlu0 0
        %678 = vperm.xlu0 %677, %v652
        %v679 = vpop.permute.xlu0 %678
        %680 = vset.pattern.permute.xlu0 0
        %681 = vperm.xlu0 %680, %v653
        %v682 = vpop.permute.xlu0 %681
        %683 = vset.pattern.permute.xlu0 0
        %684 = vperm.xlu0 %683, %v654
        %v685 = vpop.permute.xlu0 %684
        %686 = vset.pattern.permute.xlu0 0
        %687 = vperm.xlu0 %686, %v655
        %v688 = vpop.permute.xlu0 %687
        %v689 = vperm.slane %v667, %v510
        %v690 = vperm.slane %v670, %v510
        %v691 = vperm.slane %v673, %v510
        %v692 = vperm.slane %v676, %v510
        %v693 = vperm.slane %v679, %v510
        %v694 = vperm.slane %v682, %v510
        %v695 = vperm.slane %v685, %v510
        %v696 = vperm.slane %v688, %v510
        %v697 = vsel %vm519, %v690, %v689
        %v698 = vsel %vm521, %v691, %v697
        %v699 = vsel %vm523, %v692, %v698
        %v700 = vsel %vm525, %v693, %v699
        %v701 = vsel %vm527, %v694, %v700
        %v702 = vsel %vm529, %v695, %v701
        %v703 = vsel %vm531, %v696, %v702
        %v704 = vsel %vm534, %v703, 0
        %706 = vmatpush.msra.mxu0 0.0
        %707 = vmatpush.msra.mxu0 0.0
        %708 = vmatpush.msra.mxu0 0.0
        %709 = vmatpush.msra.mxu0 0.0
        %710 = vmatpush.msra.mxu0 0.0
        %711 = vmatpush.msra.mxu0 0.0
        %712 = vmatpush.msra.mxu0 0.0
        %713 = vmatpush.msra.mxu0 0.0
        %714 = vmatpush.msra.mxu0 0.0
        %715 = vmatpush.msra.mxu0 0.0
        %716 = vmatpush.msra.mxu0 0.0
        %717 = vmatpush.msra.mxu0 0.0
        %718 = vmatpush.msra.mxu0 0.0
        %719 = vmatpush.msra.mxu0 0.0
        %720 = vmatpush.msra.mxu0 0.0
        %721 = vmatpush.msra.mxu0 %v656
        %722 = vmatmul.f32.gmra.mxu0 %v704
        %v723 = vpop.f32.mrf.mxu0
        %v724 = vadd.f32 0.0, %v723
        %725 = vdwg.mxu0
        %v726 = vrot.slane %v724, 4
        %vm727 = vcmask 1047556
        %v728 = vsel %vm727, 0.0, %v726
        %v730 = vunpack.c.l.s4 1983009808
        %v731 = vunpack.c.0.s8 %v730
        %v732 = vperm.slane %v724, %v731
        %v734 = vunpack.c.l.s4 1983009808
        %v735 = vunpack.c.0.s8 %v734
        %v736 = vperm.slane %v728, %v735
        %v737 = vrot.slane %v732, 4
        %v738 = vsel %vm727, 0.0, %v737
        %v740 = vunpack.c.l.s4 1934713408
        %v741 = vunpack.c.0.s8 %v740
        %v742 = vperm.slane %v732, %v741
        %v744 = vunpack.c.l.s4 1934713408
        %v745 = vunpack.c.0.s8 %v744
        %v746 = vperm.slane %v738, %v745
        %v747 = vrot.slane %v736, 4
        %v748 = vsel %vm727, 0.0, %v747
        %v750 = vunpack.c.l.s4 1934713408
        %v751 = vunpack.c.0.s8 %v750
        %v752 = vperm.slane %v736, %v751
        %v754 = vunpack.c.l.s4 1934713408
        %v755 = vunpack.c.0.s8 %v754
        %v756 = vperm.slane %v748, %v755
        %v757 = vrot.slane %v742, 4
        %v758 = vsel %vm727, 0.0, %v757
        %v759 = vrot.slane %v746, 4
        %v760 = vsel %vm727, 0.0, %v759
        %v761 = vrot.slane %v752, 4
        %v762 = vsel %vm727, 0.0, %v761
        %v763 = vrot.slane %v756, 4
        %v764 = vsel %vm727, 0.0, %v763
        %766 = vrot.lane.b32.xlu0 %v758, 16
        %v767 = vpop.permute.xlu0 %766
        %770 = vrot.lane.b32.xlu0 %v746, 32
        %v771 = vpop.permute.xlu0 %770
        %774 = vrot.lane.b32.xlu0 %v760, 48
        %v775 = vpop.permute.xlu0 %774
        %778 = vrot.lane.b32.xlu0 %v752, 64
        %v779 = vpop.permute.xlu0 %778
        %782 = vrot.lane.b32.xlu0 %v762, 80
        %v783 = vpop.permute.xlu0 %782
        %786 = vrot.lane.b32.xlu0 %v756, 96
        %v787 = vpop.permute.xlu0 %786
        %790 = vrot.lane.b32.xlu0 %v764, 112
        %v791 = vpop.permute.xlu0 %790
        %vm793 = vcmask 130048
        %v794 = vsel %vm793, %v742, %v767
        %v795 = vsel %vm382, %v794, %v771
        %vm796 = vcmask 392192
        %v797 = vsel %vm796, %v795, %v775
        %vm798 = vcmask 523264
        %v799 = vsel %vm798, %v797, %v779
        %vm800 = vcmask 654336
        %v801 = vsel %vm800, %v799, %v783
        %vm802 = vcmask 785408
        %v803 = vsel %vm802, %v801, %v787
        %vm804 = vcmask 916480
        %v805 = vsel %vm804, %v803, %v791
        %806 = vst [vmem:[%s375] sm:$0x1] %v805
        %s807 = sand.u32 %s176, 1
        %s808 = scalar_lea.sflag [#allocation4], %s807
        %s809 = sand.u32 %s176, 1
        %s810 = scalar_lea.vmem [#allocation11], %s809
        // Predicated region
        $region65: #{tpu_custom_call.1} parent=43 // pred_check
          %p811 = pneg %p186
        $region66: #{tpu_custom_call.1} parent=43 // pred_check_branch
          %813 = sbr.rel (%p811) target = $region68
        $region67: #{tpu_custom_call.1} parent=43 // pred_region
          %815 = vsyncadd %s808, 0
          %s816 = scalar_lea.hbm %s6, %s27
          %s818 = sshll.u32 %s810, 4
          %s819 = int_to_ptr.vmem [resolvable:$true] %s818
          %s820 = sshll.u32 %s816, 4
          %s821 = int_to_ptr.hbm [resolvable:$true] %s820
          %823 = dma.vmem_to_hbm [thread:$0]  %s819, 16, %s821, %s808
        $region68: #{tpu_custom_call.1} parent=43 // pred_fallthru
          _
      $region44: #{tpu_custom_call.1} parent=5 // pred_fallthru
        _
      %p824 = scmp.le.s32.totalorder 2, %s22
      // Predicated region
      $region69: #{tpu_custom_call.1} parent=5 // pred_check
        %p825 = pneg %p824
      $region70: #{tpu_custom_call.1} parent=5 // pred_check_branch
        %827 = sbr.rel (%p825) target = $region72
      $region71: #{tpu_custom_call.1} parent=5 // pred_region
        %s828 = ssub.s32 %s22, 2
        // Predicated region
        $region73: #{tpu_custom_call.1} parent=71 // pred_check
          %p829 = pneg %p192
        $region74: #{tpu_custom_call.1} parent=71 // pred_check_branch
          %831 = sbr.rel (%p829) target = $region76
        $region75: #{tpu_custom_call.1} parent=71 // pred_region
          %s832 = sand.u32 %s177, 1
          %s833 = scalar_lea.sflag [#allocation4], %s832
          %s834 = sand.u32 %s177, 1
          %s835 = scalar_lea.vmem [#allocation11], %s834
          %837 = dma.done %s833, 16
        $region76: #{tpu_custom_call.1} parent=71 // pred_fallthru
          _
      $region72: #{tpu_custom_call.1} parent=5 // pred_fallthru
        _
    $region6: #{tpu_custom_call.1} parent=1 // loop_footer
      %s26 = sadd.s32 1, %s22
    $region7: #{tpu_custom_call.1} parent=1 // loop_footer_branch
      %21 = sbr.rel target = $region3
    $region8: #{tpu_custom_call.1} parent=1 // loop_exit
      _
    %838 = vsyncpa [#allocation3], 1
    %s839 = scalar_lea.sflag [#allocation3], 1
    %840 = vsyncpa %s839, 1
    %841 = vsyncpa [#allocation6], 1
    %s842 = scalar_lea.sflag [#allocation6], 1
    %843 = vsyncpa %s842, 1
    %844 = vsyncpa [#allocation9], 1
    %845 = vsyncpa [#allocation4], 1
    %s846 = scalar_lea.sflag [#allocation4], 1
    %847 = vsyncpa %s846, 1

</llo_original>
